<compile_context>
chip_gen: v5e
topology: v5e:2x2
jax: 0.10.0
libtpu: 0.0.40
codegen_flags: <defaults>
</compile_context>

<pallas_src>
import jax
import jax.numpy as jnp
from jax.experimental import pallas as pl
from jax.experimental.pallas import tpu as pltpu

_GROUP = 8  # 8 rows == one full (8, 128) f32 vreg tile; also the number of outstanding row DMAs


def positional_encoding(d_model: int, max_length: int) -> jnp.ndarray:
    """Standard sinusoidal positional encoding, shape (max_length, d_model)."""
    pos = jnp.arange(max_length, dtype=jnp.float32)[:, None]           # (L, 1)
    dim = jnp.arange(d_model, dtype=jnp.float32)[None, :]              # (1, D)
    angle_rates = jnp.power(10000.0, -(2.0 * jnp.floor(dim / 2.0)) / d_model)
    angle = pos * angle_rates                                          # (L, D)
    pe = jnp.where((jnp.arange(d_model)[None, :] % 2) == 0,
                   jnp.sin(angle), jnp.cos(angle))
    return pe.astype(jnp.float32)


def _round_up(x: int, m: int) -> int:
    return (x + m - 1) // m * m


def _vmem_capacity_bytes() -> int:
    try:
        return int(pltpu.get_tpu_info().vmem_capacity_bytes)
    except Exception:
        return 64 << 20   # conservative default (v7x has the smallest physical VMEM)


# ----------------------------------------------------------------------------- kernels

def _embed_onehot_kernel(ids_ref, emb_ref, pos_ref, out_ref):
    """Small-vocab path: gather T rows via a one-hot (T, V) @ (V, D) MXU matmul."""
    vocab = emb_ref.shape[0]
    ids = ids_ref[...]                                                  # (T, 1) int32
    iota = jax.lax.broadcasted_iota(jnp.int32, (ids.shape[0], vocab), 1)
    one_hot = (iota == ids).astype(emb_ref.dtype)                       # (T, V)
    rows = jnp.dot(one_hot, emb_ref[...], preferred_element_type=jnp.float32)
    out_ref[...] = (rows + pos_ref[...].astype(jnp.float32)).astype(out_ref.dtype)


def _embed_vmem_gather_kernel(ids_ref, emb_ref, pos_ref, out_ref, acc_ref):
    """Resident-table path: per-row VMEM gather in groups of 8, then one dense add."""
    # ids_ref : SMEM (n_pad,) int32   -- scalar-prefetched token ids
    # emb_ref : VMEM (V, D)           -- resident embedding table (constant block index)
    # pos_ref : VMEM (T, D) f32       -- flattened positional rows for this token tile
    # out_ref : VMEM (T, D)
    # acc_ref : VMEM (T, D)           -- gathered rows (table dtype)
    i = pl.program_id(0)
    tile = out_ref.shape[0]
    base = i * tile

    def group(g, carry):
        row0 = pl.multiple_of(g * _GROUP, _GROUP)
        # python-unrolled: 8 independent id-read -> dynamic-row-load -> store chains in flight
        for k in range(_GROUP):
            tok = ids_ref[base + row0 + k]
            acc_ref[pl.ds(row0 + k, 1), :] = emb_ref[pl.ds(tok, 1), :]
        return carry

    jax.lax.fori_loop(0, tile // _GROUP, group, 0)

    # Positional add hoisted out of the gather loop: one full-width (T, D) VPU add,
    # one lane-dense unmasked store, explicit cast to the output dtype (bf16-safe).
    out_ref[...] = (acc_ref[...].astype(jnp.float32)
                    + pos_ref[...].astype(jnp.float32)).astype(out_ref.dtype)


def _embed_hbm_gather_kernel(ids_ref, pos_ref, emb_hbm, out_ref, stage_ref, copy_sems):
    """Large-vocab path: table stays in HBM; ids drive per-row async-copy gathers."""
    # ids_ref  : SMEM (n_pad,) int32        -- scalar-prefetched token ids
    # pos_ref  : VMEM (T, D) f32            -- flattened positional rows for this tile
    # emb_hbm  : HBM  (V, D)                -- raw table ref (memory_space=pl.ANY)
    # stage_ref: VMEM (_GROUP, D)           -- DMA staging buffer (8 rows)
    # copy_sems: DMA semaphores (_GROUP,)
    i = pl.program_id(0)
    tile = out_ref.shape[0]
    base = i * tile

    def row_copy(row, slot):
        tok = ids_ref[base + row]
        return pltpu.make_async_copy(emb_hbm.at[pl.ds(tok, 1), :],
                                     stage_ref.at[pl.ds(slot, 1), :],
                                     copy_sems.at[slot])

    @pl.loop(0, tile // _GROUP)
    def _(g):
        row0 = pl.multiple_of(g * _GROUP, _GROUP)
        for k in range(_GROUP):          # issue 8 row-gather DMAs back-to-back (8 outstanding)
            row_copy(row0 + k, k).start()
        for k in range(_GROUP):          # retire them
            row_copy(row0 + k, k).wait()
        rows = stage_ref[...].astype(jnp.float32)                        # (8, D) dense
        pos = pos_ref[pl.ds(row0, _GROUP), :].astype(jnp.float32)
        out_ref[pl.ds(row0, _GROUP), :] = (rows + pos).astype(out_ref.dtype)
    # TODO(synk): double-buffer stage_ref (2 x _GROUP slots) to overlap group g+1's DMAs
    # with group g's add/store once DMA latency shows on the critical path.


# ----------------------------------------------------------------------------- wrappers

def _call_onehot(ids, emb_table, pos_flat, tile, out_dtype, vmem_limit):
    n_pad, d_model = pos_flat.shape
    vocab = emb_table.shape[0]
    ids2d = ids.reshape(n_pad, 1)
    cost = pl.CostEstimate(
        flops=2 * n_pad * vocab * d_model + n_pad * d_model,
        transcendentals=0,
        bytes_accessed=(n_pad * 4 + vocab * d_model * emb_table.dtype.itemsize
                        + n_pad * d_model * 4 + n_pad * d_model * out_dtype.itemsize))
    return pl.pallas_call(
        _embed_onehot_kernel,
        out_shape=jax.ShapeDtypeStruct((n_pad, d_model), out_dtype),
        grid=(n_pad // tile,),
        in_specs=[
            pl.BlockSpec((tile, 1), lambda i: (i, 0)),
            pl.BlockSpec((vocab, d_model), lambda i: (0, 0)),   # resident table (constant block)
            pl.BlockSpec((tile, d_model), lambda i: (i, 0)),
        ],
        out_specs=pl.BlockSpec((tile, d_model), lambda i: (i, 0)),
        compiler_params=pltpu.CompilerParams(
            dimension_semantics=("parallel",), vmem_limit_bytes=vmem_limit),
        cost_estimate=cost,
    )(ids2d, emb_table, pos_flat)


def _call_vmem_gather(ids, emb_table, pos_flat, tile, out_dtype, vmem_limit):
    n_pad, d_model = pos_flat.shape
    vocab = emb_table.shape[0]
    grid_spec = pltpu.PrefetchScalarGridSpec(
        num_scalar_prefetch=1,
        grid=(n_pad // tile,),
        in_specs=[
            pl.BlockSpec((vocab, d_model), lambda i, ids_ref: (0, 0)),  # resident table
            pl.BlockSpec((tile, d_model), lambda i, ids_ref: (i, 0)),   # flat pos tile
        ],
        out_specs=pl.BlockSpec((tile, d_model), lambda i, ids_ref: (i, 0)),
        scratch_shapes=[pltpu.VMEM((tile, d_model), emb_table.dtype)],
    )
    cost = pl.CostEstimate(
        flops=n_pad * d_model,
        transcendentals=0,
        bytes_accessed=(n_pad * 4 + vocab * d_model * emb_table.dtype.itemsize
                        + n_pad * d_model * 4 + n_pad * d_model * out_dtype.itemsize))
    return pl.pallas_call(
        _embed_vmem_gather_kernel,
        out_shape=jax.ShapeDtypeStruct((n_pad, d_model), out_dtype),
        grid_spec=grid_spec,
        compiler_params=pltpu.CompilerParams(
            dimension_semantics=("parallel",), vmem_limit_bytes=vmem_limit),
        cost_estimate=cost,
    )(ids, emb_table, pos_flat)


def _call_hbm_gather(ids, emb_table, pos_flat, tile, out_dtype, vmem_limit):
    n_pad, d_model = pos_flat.shape
    grid_spec = pltpu.PrefetchScalarGridSpec(
        num_scalar_prefetch=1,
        grid=(n_pad // tile,),
        in_specs=[
            pl.BlockSpec((tile, d_model), lambda i, ids_ref: (i, 0)),   # flat pos tile
            pl.BlockSpec(memory_space=pl.ANY),                          # table stays in HBM
        ],
        out_specs=pl.BlockSpec((tile, d_model), lambda i, ids_ref: (i, 0)),
        scratch_shapes=[pltpu.VMEM((_GROUP, d_model), emb_table.dtype),
                        pltpu.SemaphoreType.DMA((_GROUP,))],
    )
    cost = pl.CostEstimate(
        flops=n_pad * d_model,
        transcendentals=0,
        bytes_accessed=(n_pad * 4 + n_pad * d_model * emb_table.dtype.itemsize
                        + n_pad * d_model * 4 + n_pad * d_model * out_dtype.itemsize))
    return pl.pallas_call(
        _embed_hbm_gather_kernel,
        out_shape=jax.ShapeDtypeStruct((n_pad, d_model), out_dtype),
        grid_spec=grid_spec,
        compiler_params=pltpu.CompilerParams(
            dimension_semantics=("parallel",), vmem_limit_bytes=vmem_limit),
        cost_estimate=cost,
    )(ids, pos_flat, emb_table)


def embedding_forward(token_ids: jnp.ndarray,
                      emb_table: jnp.ndarray,
                      pos_enc: jnp.ndarray,
                      *,
                      force_path: str | None = None,
                      onehot_vocab_max: int = 2048) -> jnp.ndarray:
    """token_ids: (B, S) int32 -> (B, S, D) in emb_table.dtype."""
    batch, seq = token_ids.shape
    vocab, d_model = emb_table.shape
    assert pos_enc.shape[0] >= seq and pos_enc.shape[1] == d_model
    out_dtype = emb_table.dtype
    itemsize = emb_table.dtype.itemsize

    n_tok = batch * seq
    # Clamp ids so an out-of-range id can never silently read adjacent VMEM/HBM.
    ids = jnp.clip(token_ids.reshape(-1).astype(jnp.int32), 0, vocab - 1)
    # Flattened positional rows matching the flattened token order (b*S + s).
    pos_flat = jnp.tile(pos_enc[:seq].astype(jnp.float32), (batch, 1))   # (B*S, D)

    # Token-tile size: multiple of 8 rows, targeting ~1 MiB of output per grid step.
    rows_1mb = max(_GROUP, (1 << 20) // max(d_model * itemsize, 1))
    tile = min(_round_up(n_tok, _GROUP), _round_up(min(rows_1mb, 1024), _GROUP))
    n_pad = _round_up(n_tok, tile)
    if n_pad != n_tok:
        ids = jnp.pad(ids, (0, n_pad - n_tok))                # pad with valid id 0
        pos_flat = jnp.pad(pos_flat, ((0, n_pad - n_tok), (0, 0)))

    # Per-generation VMEM budgeting (v5e/v6e 128 MiB, v7x 64 MiB physical).
    table_bytes = vocab * d_model * itemsize
    tile_bytes = tile * d_model * 4
    budget = int(_vmem_capacity_bytes() * 0.8)
    # Resident-table footprint: double-buffered table + pos/out tiles + gather scratch.
    resident_need = 2 * table_bytes + 4 * tile_bytes + tile * d_model * itemsize + (1 << 20)

    if force_path is not None:
        path = force_path
    elif vocab <= onehot_vocab_max and resident_need <= budget:
        path = "onehot"
    elif resident_need <= budget:
        path = "vmem_gather"
    else:
        path = "hbm_gather"          # scalable primary path for real vocabularies

    if path == "onehot":
        vmem_limit = int(min(budget, max(resident_need, 32 << 20)))
        out_flat = _call_onehot(ids, emb_table, pos_flat, tile, out_dtype, vmem_limit)
    elif path == "vmem_gather":
        vmem_limit = int(min(budget, max(resident_need, 32 << 20)))
        out_flat = _call_vmem_gather(ids, emb_table, pos_flat, tile, out_dtype, vmem_limit)
    elif path == "hbm_gather":
        vmem_limit = int(min(budget, max(6 * tile_bytes + (4 << 20), 32 << 20)))
        out_flat = _call_hbm_gather(ids, emb_table, pos_flat, tile, out_dtype, vmem_limit)
    else:
        raise ValueError(f"unknown path: {path}")

    out = out_flat[:n_tok].reshape(batch, seq, d_model)
    # dropout(p=0.0) is the identity at inference time.
    # TODO(synk): stochastic dropout (p > 0) would use pltpu.prng_seed / prng_random_bits in-kernel.
    return out


if __name__ == "__main__":
    vocab_size = 64
    d_model = 128
    max_length = 16
    batch = 2
    seq = 8

    key = jax.random.PRNGKey(0)
    k_emb, k_ids = jax.random.split(key)

    # deterministic parameter init (matches torch.nn.Embedding default: N(0, 1))
    emb_table = jax.random.normal(k_emb, (vocab_size, d_model), dtype=jnp.float32)
    pos_enc = positional_encoding(d_model, max_length)
    token_ids = jax.random.randint(k_ids, (batch, seq), 0, vocab_size, dtype=jnp.int32)

    # plain-JAX reference (gather + add is exact)
    ref = emb_table[token_ids] + pos_enc[:seq][None, :, :]

    # 1) auto-dispatched path (small vocab -> one-hot MXU path)
    out = jax.block_until_ready(embedding_forward(token_ids, emb_table, pos_enc))
    assert out.shape == (batch, seq, d_model)
    assert jnp.allclose(out, ref, atol=1e-5), "auto path mismatch vs reference"

    # 2) explicitly exercise the resident-VMEM gather path and the HBM-DMA gather path
    for p in ("vmem_gather", "hbm_gather"):
        o = jax.block_until_ready(
            embedding_forward(token_ids, emb_table, pos_enc, force_path=p))
        assert jnp.allclose(o, ref, atol=1e-5), f"{p} path mismatch vs reference"

    print("KERNEL_OK")
</pallas_src>

<mosaic_0001>
module attributes {stable_mosaic.version = 11 : i64} {
  func.func @_embed_onehot_kernel(%arg0: i32, %arg1: memref<16x1xi32, #tpu.memory_space<vmem>>, %arg2: memref<64x128xf32, #tpu.memory_space<vmem>>, %arg3: memref<16x128xf32, #tpu.memory_space<vmem>>, %arg4: memref<16x128xf32, #tpu.memory_space<vmem>>) attributes {dimension_semantics = [#tpu.dimension_semantics<parallel>], iteration_bounds = array<i64: 1>, scalar_prefetch = 0 : i64, scratch_operands = 0 : i64, tpu.core_type = #tpu.core_type<tc>, window_params = [{transform_indices = @transform_0, window_bounds = array<i64: 16, 1>}, {pipeline_mode = #tpu.pipeline_mode<synchronous>, transform_indices = @transform_1, window_bounds = array<i64: 64, 128>}, {transform_indices = @transform_2, window_bounds = array<i64: 16, 128>}, {transform_indices = @transform_3, window_bounds = array<i64: 16, 128>}]} {
    %c0 = arith.constant 0 : index
    %c0_0 = arith.constant 0 : index
    %0 = vector.load %arg1[%c0, %c0_0] : memref<16x1xi32, #tpu.memory_space<vmem>>, vector<16x1xi32>
    %1 = tpu.iota {dimensions = array<i32: 1>} : vector<16x64xi32>
    %2 = vector.broadcast %0 : vector<16x1xi32> to vector<16x64xi32>
    %3 = arith.cmpi eq, %1, %2 : vector<16x64xi32>
    %4 = arith.extui %3 : vector<16x64xi1> to vector<16x64xi32>
    %5 = arith.sitofp %4 : vector<16x64xi32> to vector<16x64xf32>
    %c0_1 = arith.constant 0 : index
    %c0_2 = arith.constant 0 : index
    %6 = vector.load %arg2[%c0_1, %c0_2] : memref<64x128xf32, #tpu.memory_space<vmem>>, vector<64x128xf32>
    %cst = arith.constant dense<0.000000e+00> : vector<16x128xf32>
    %7 = tpu.matmul %5, %6, %cst {dimension_numbers = #tpu.dot_dimension_numbers<[1], [0], [0], [1], [0, 0, 1, 1], [], []>} : vector<16x64xf32>, vector<64x128xf32>, vector<16x128xf32> -> vector<16x128xf32>
    %c0_3 = arith.constant 0 : index
    %c0_4 = arith.constant 0 : index
    %8 = vector.load %arg3[%c0_3, %c0_4] : memref<16x128xf32, #tpu.memory_space<vmem>>, vector<16x128xf32>
    %9 = arith.addf %7, %8 : vector<16x128xf32>
    %c0_5 = arith.constant 0 : index
    %c0_6 = arith.constant 0 : index
    %10 = vector.load %arg4[%c0_5, %c0_6] : memref<16x128xf32, #tpu.memory_space<vmem>>, vector<16x128xf32>
    tpu.vector_store %arg4[%c0_5, %c0_6], %9 {strides = array<i32>} : memref<16x128xf32, #tpu.memory_space<vmem>>, vector<16x128xf32>,
    return
  }
  func.func @transform_0(%arg0: i32) -> (i32, i32) {
    %c0_i32 = arith.constant 0 : i32
    %c0_i32_0 = arith.constant 0 : i32
    return %arg0, %c0_i32 : i32, i32
  }
  func.func @transform_1(%arg0: i32) -> (i32, i32) {
    %c0_i32 = arith.constant 0 : i32
    %c0_i32_0 = arith.constant 0 : i32
    %c0_i32_1 = arith.constant 0 : i32
    return %c0_i32, %c0_i32_0 : i32, i32
  }
  func.func @transform_2(%arg0: i32) -> (i32, i32) {
    %c0_i32 = arith.constant 0 : i32
    %c0_i32_0 = arith.constant 0 : i32
    return %arg0, %c0_i32 : i32, i32
  }
  func.func @transform_3(%arg0: i32) -> (i32, i32) {
    %c0_i32 = arith.constant 0 : i32
    %c0_i32_0 = arith.constant 0 : i32
    return %arg0, %c0_i32 : i32, i32
  }
}

</mosaic_0001>

<llo_original>
// kernel: tpu_custom_call.1
$region0: #{tpu_custom_call.1}
  #allocation0 [shape = 'u32[]', space=smem, size = 0x4, offset = 0x4, fixed_abs, tag = 'smem constant byte address 0x4 - core index']
  #allocation1 [shape = 'u32[72,128]{1,0:T(1,128)}', space=vmem, size = 0x9000, scoped, tag = 'internal scratch']
  %s0 = inlined_call_operand.vmem [shape: s32[16,1], index: 0, kind: input, shape index: {}]
  %s1 = inlined_call_operand.hbm [shape: f32[64,128], index: 1, kind: input, shape index: {}]
  %s2 = inlined_call_operand.vmem [shape: f32[16,128], index: 2, kind: input, shape index: {}]
  %s3 = inlined_call_operand.hbm [shape: f32[16,128], index: 3, kind: output, shape index: {}]
  %s4 = sld [smem:[#allocation0]]
  $region26: #{tpu_custom_call.1} parent=0
    _
  %s6 = ssub.s32 1, %s4
  %s7 = scalar_select 0, %s6, %s4
  $region1: #{tpu_custom_call.1} parent=0
    #allocation2 [shape = 'u8[32768]{0}', space=vmem, size = 0x8000, scoped, tag = 'input window, operand 1, single buffered']
    #allocation3 [shape = 's32[1]{0}', space=sflag, size = 0x4, scoped, tag = 'scoped memory for tpu_custom_call.1']
    #allocation4 [shape = 's32[1]{0}', space=sflag, size = 0x4, scoped, tag = 'scoped memory for tpu_custom_call.1']
    #allocation5 [shape = 'u8[8192]{0}', space=vmem, size = 0x2000, scoped, tag = 'output window, operand 0, single buffered']
    %8 = vsyncpa [#allocation3], 0
    %9 = vsyncpa [#allocation4], 0
    // Predicated region
    $region2: #{tpu_custom_call.1} parent=1 // pred_check
      _
    $region3: #{tpu_custom_call.1} parent=1 // pred_check_branch
      %11 = sbr.rel (0) target = $region5
    $region4: #{tpu_custom_call.1} parent=1 // pred_region
      _
    $region5: #{tpu_custom_call.1} parent=1 // pred_fallthru
      _
    // Predicated region
    $region6: #{tpu_custom_call.1} parent=1 // pred_check
      _
    $region7: #{tpu_custom_call.1} parent=1 // pred_check_branch
      %13 = sbr.rel (0) target = $region9
    $region8: #{tpu_custom_call.1} parent=1 // pred_region
      %15 = vsyncadd [#allocation3], 0
      %s16 = sshll.u32 %s1, 4
      %s17 = int_to_ptr.hbm [resolvable:$true] %s16
      %s18 = sshll.u32 [#allocation2], 4
      %s19 = int_to_ptr.vmem [resolvable:$true] %s18
      %24 = dma.hbm_to_vmem [thread:$0]  %s17, 1024, %s19, [#allocation3], 128, 128, 8
    $region9: #{tpu_custom_call.1} parent=1 // pred_fallthru
      _
    // Predicated region
    $region10: #{tpu_custom_call.1} parent=1 // pred_check
      _
    $region11: #{tpu_custom_call.1} parent=1 // pred_check_branch
      %26 = sbr.rel (0) target = $region13
    $region12: #{tpu_custom_call.1} parent=1 // pred_region
      _
    $region13: #{tpu_custom_call.1} parent=1 // pred_fallthru
      _
    // Predicated region
    $region14: #{tpu_custom_call.1} parent=1 // pred_check
      _
    $region15: #{tpu_custom_call.1} parent=1 // pred_check_branch
      %28 = sbr.rel (0) target = $region17
    $region16: #{tpu_custom_call.1} parent=1 // pred_region
      %30 = dma.done [#allocation3], 1024
    $region17: #{tpu_custom_call.1} parent=1 // pred_fallthru
      _
    %v31 = vld [vmem:[%s0] sm:$0xff]
    %v32 = vld [vmem:[%s0 + $0x8] sm:$0xff]
    %v33 = vlaneseq
    %v34 = vand.u32 %v33, 127
    %35 = vset.pattern.permute.xlu0 0
    %36 = vperm.xlu0 %35, %v31
    %v37 = vpop.permute.xlu0 %36
    %38 = vset.pattern.permute.xlu0 0
    %39 = vperm.xlu0 %38, %v32
    %v40 = vpop.permute.xlu0 %39
    %vm41 = vcmp.eq.s32.totalorder %v34, %v37
    %vm42 = vcmp.eq.s32.totalorder %v34, %v40
    %v43 = vsel %vm41, 1, 0
    %v44 = vsel %vm42, 1, 0
    %v45 = vcvt.s32.f32 %v43
    %v46 = vcvt.s32.f32 %v44
    %v47 = vld [vmem:[#allocation2] sm:$0xff]
    %v48 = vld [vmem:[#allocation2 + $0x8] sm:$0xff]
    %v49 = vld [vmem:[#allocation2 + $0x10] sm:$0xff]
    %v50 = vld [vmem:[#allocation2 + $0x18] sm:$0xff]
    %v51 = vld [vmem:[#allocation2 + $0x20] sm:$0xff]
    %v52 = vld [vmem:[#allocation2 + $0x28] sm:$0xff]
    %v53 = vld [vmem:[#allocation2 + $0x30] sm:$0xff]
    %v54 = vld [vmem:[#allocation2 + $0x38] sm:$0xff]
    %v55 = vld [vmem:[%s2] sm:$0xff]
    %v56 = vld [vmem:[%s2 + $0x8] sm:$0xff]
    %vm57 = vcmask 523264
    %v59 = vsel %vm57, %v45, 0
    %v62 = vsel %vm57, %v46, 0
    %64 = vmatpush.msra.mxu0 0.0
    %65 = vmatpush.msra.mxu0 0.0
    %66 = vmatpush.msra.mxu0 0.0
    %67 = vmatpush.msra.mxu0 0.0
    %68 = vmatpush.msra.mxu0 0.0
    %69 = vmatpush.msra.mxu0 0.0
    %70 = vmatpush.msra.mxu0 0.0
    %71 = vmatpush.msra.mxu0 0.0
    %72 = vmatpush.msra.mxu0 %v54
    %73 = vmatpush.msra.mxu0 %v53
    %74 = vmatpush.msra.mxu0 %v52
    %75 = vmatpush.msra.mxu0 %v51
    %76 = vmatpush.msra.mxu0 %v50
    %77 = vmatpush.msra.mxu0 %v49
    %78 = vmatpush.msra.mxu0 %v48
    %79 = vmatpush.msra.mxu0 %v47
    %80 = vmatmul.f32.gmra.mxu0 %v59
    %v81 = vpop.f32.mrf.mxu0
    %v82 = vadd.f32 %v55, %v81
    %83 = vmatmul.f32.gmra.mxu0 %v62
    %v84 = vpop.f32.mrf.mxu0
    %v85 = vadd.f32 %v56, %v84
    %86 = vdwg.mxu0
    %87 = vst [vmem:[#allocation5] sm:$0xff] %v82
    %88 = vst [vmem:[#allocation5 + $0x8] sm:$0xff] %v85
    // Predicated region
    $region18: #{tpu_custom_call.1} parent=1 // pred_check
      _
    $region19: #{tpu_custom_call.1} parent=1 // pred_check_branch
      %90 = sbr.rel (0) target = $region21
    $region20: #{tpu_custom_call.1} parent=1 // pred_region
      %92 = vsyncadd [#allocation4], 0
      %s93 = sshll.u32 [#allocation5], 4
      %s94 = int_to_ptr.vmem [resolvable:$true] %s93
      %s95 = sshll.u32 %s3, 4
      %s96 = int_to_ptr.hbm [resolvable:$true] %s95
      %101 = dma.vmem_to_hbm [thread:$0]  %s94, 256, %s96, [#allocation4], 128, 128, 8
    $region21: #{tpu_custom_call.1} parent=1 // pred_fallthru
      _
    // Predicated region
    $region22: #{tpu_custom_call.1} parent=1 // pred_check
      _
    $region23: #{tpu_custom_call.1} parent=1 // pred_check_branch
      %103 = sbr.rel (0) target = $region25
    $region24: #{tpu_custom_call.1} parent=1 // pred_region
      %105 = dma.done [#allocation4], 256
    $region25: #{tpu_custom_call.1} parent=1 // pred_fallthru
      _
    %106 = vsyncpa [#allocation3], 1
    %107 = vsyncpa [#allocation4], 1

</llo_original>
